<compile_context>
chip_gen: v6e
topology: v6e:2x2x1
jax: 0.10.0
libtpu: 0.0.40
codegen_flags: <defaults>
</compile_context>

<pallas_src>
import jax
import jax.numpy as jnp
from jax.experimental import pallas as pl
from jax.experimental.pallas import tpu as pltpu


# --------------------------------------------------------------------------- #
# Kernel: one chunk of C graphs per grid step.
#   adj_ref  : [CN, CN]      bf16  block-diagonal adjacency (A[dst, src] = edge count)
#   x_ref    : [CN, F]       bf16  node features (C graphs stacked along rows)
#   pool_ref : [C, CN]       bf16  block-diagonal mean-pooling matrix (entries 1/N)
#   w_ref    : [2F + 3H, H]  bf16  packed weights: rows 0:F      -> W1_self
#                                                 rows F:2F      -> W1_nbr
#                                                 rows 2F:2F+H   -> W2_self
#                                                 rows 2F+H:2F+2H-> W2_nbr
#                                                 rows 2F+2H:    -> W_out (zero-padded to H cols)
#   b_ref    : [3, H]        f32   row 0 = b1, row 1 = b2, row 2 = b_out (zero-padded)
#   out_ref  : [C, O]        f32   per-graph outputs (graphs on the sublane axis)
# --------------------------------------------------------------------------- #
def schet_graph_kernel(adj_ref, x_ref, pool_ref, w_ref, b_ref, out_ref):
    F = x_ref.shape[1]
    H = b_ref.shape[1]
    O = out_ref.shape[1]

    adj = adj_ref[...]                                    # [CN, CN] bf16
    x = x_ref[...]                                        # [CN, F]  bf16

    # Row-boundary (sublane-aligned) slices of the packed weight slab -> no relayout.
    w1s = w_ref[0:F, :]                                   # [F, H]
    w1n = w_ref[F:2 * F, :]                               # [F, H]
    w2s = w_ref[2 * F:2 * F + H, :]                       # [H, H]
    w2n = w_ref[2 * F + H:2 * F + 2 * H, :]               # [H, H]
    wo = w_ref[2 * F + 2 * H:2 * F + 3 * H, :]            # [H, H] (cols >= O are zero)
    b1 = b_ref[0:1, :]                                    # [1, H]
    b2 = b_ref[1:2, :]                                    # [1, H]
    bo = b_ref[2:3, 0:O]                                  # [1, O]

    # ---- layer 1: h1 = relu(X W_self + A (X W_nbr) + b1) ----
    self1 = jnp.dot(x, w1s, preferred_element_type=jnp.float32)              # [CN, H]
    msg1 = jnp.dot(x, w1n, preferred_element_type=jnp.float32)               # [CN, H]
    nbr1 = jnp.dot(adj, msg1.astype(jnp.bfloat16),
                   preferred_element_type=jnp.float32)                       # [CN, H]
    h1 = jnp.maximum(self1 + nbr1 + b1, 0.0).astype(jnp.bfloat16)

    # ---- layer 2 ----
    self2 = jnp.dot(h1, w2s, preferred_element_type=jnp.float32)             # [CN, H]
    msg2 = jnp.dot(h1, w2n, preferred_element_type=jnp.float32)              # [CN, H]
    nbr2 = jnp.dot(adj, msg2.astype(jnp.bfloat16),
                   preferred_element_type=jnp.float32)                       # [CN, H]
    h2 = jnp.maximum(self2 + nbr2 + b2, 0.0).astype(jnp.bfloat16)

    # ---- readout: block-diagonal mean pooling (1/N folded in) + linear, all on MXU ----
    pooled = jnp.dot(pool_ref[...], h2, preferred_element_type=jnp.float32)  # [C, H]
    out = jnp.dot(pooled.astype(jnp.bfloat16), wo,
                  preferred_element_type=jnp.float32)                        # [C, H]
    out_ref[...] = out[:, 0:O] + bo                                          # [C, O]


# --------------------------------------------------------------------------- #
# Plain-JAX glue
# --------------------------------------------------------------------------- #
def build_dense_adjacency(edge_index, num_nodes):
    """Scatter-add the edge list into a dense adjacency A[dst, src] (f32)."""
    src, dst = edge_index[0], edge_index[1]
    return jnp.zeros((num_nodes, num_nodes), jnp.float32).at[dst, src].add(1.0)


def build_block_diag_chunks(adj_b, graphs_per_chunk):
    """adj_b [B, N, N] -> [num_chunks, C*N, C*N] block-diagonal adjacency per chunk."""
    B, N, _ = adj_b.shape
    C = graphs_per_chunk
    num_chunks = B // C
    adj_c = adj_b.reshape(num_chunks, C, N, N)
    eye = jnp.eye(C, dtype=adj_b.dtype)                                      # [C, C]
    big = jnp.einsum("ij,kirc->kirjc", eye, adj_c)
    return big.reshape(num_chunks, C * N, C * N)


def pack_params(params):
    """Pack the 10 small parameter tensors into one weight slab + one bias slab."""
    F, H = params["w1_self"].shape
    O = params["w_out"].shape[1]
    wo_pad = jnp.pad(params["w_out"], ((0, 0), (0, H - O)))                  # [H, H]
    w_slab = jnp.concatenate(
        [params["w1_self"], params["w1_nbr"],
         params["w2_self"], params["w2_nbr"], wo_pad], axis=0
    ).astype(jnp.bfloat16)                                                   # [2F+3H, H]
    b_slab = jnp.concatenate(
        [params["b1"], params["b2"],
         jnp.pad(params["b_out"], ((0, 0), (0, H - O)))], axis=0
    ).astype(jnp.float32)                                                    # [3, H]
    return w_slab, b_slab


def schetnet_graph_forward_batched(x_b, adj_b, params, graphs_per_chunk=None):
    """Run the graph head on a batch of B graphs: x_b [B,N,F], adj_b [B,N,N] -> [B,O]."""
    B, N, F = x_b.shape
    H = params["w1_self"].shape[1]
    O = params["w_out"].shape[1]

    if graphs_per_chunk is None:
        # >=2 grid steps when possible so v7x's 2 TensorCores both get work; the extra
        # step is ~0.35 us of overhead on single-TC v5e/v6e (negligible).
        graphs_per_chunk = B // 2 if (B >= 2 and B % 2 == 0) else B
    C = graphs_per_chunk
    assert B % C == 0, "batch must divide evenly into chunks"
    num_chunks = B // C
    CN = C * N

    w_slab, b_slab = pack_params(params)
    adj_chunks = build_block_diag_chunks(adj_b, C).astype(jnp.bfloat16)      # [nc, CN, CN]
    x_chunks = x_b.reshape(num_chunks, CN, F).astype(jnp.bfloat16)           # [nc, CN, F]
    # Block-diagonal mean-pooling matrix (1/N scale folded in), shared by all chunks.
    pool = (jnp.repeat(jnp.eye(C, dtype=jnp.float32), N, axis=1) / N
            ).astype(jnp.bfloat16)                                           # [C, CN]

    out = pl.pallas_call(
        schet_graph_kernel,
        out_shape=jax.ShapeDtypeStruct((num_chunks, C, O), jnp.float32),
        grid=(num_chunks,),
        in_specs=[
            pl.BlockSpec((None, CN, CN), lambda g: (g, 0, 0)),   # per-chunk adjacency
            pl.BlockSpec((None, CN, F), lambda g: (g, 0, 0)),    # per-chunk node features
            pl.BlockSpec((C, CN), lambda g: (0, 0)),             # shared pooling matrix
            pl.BlockSpec(w_slab.shape, lambda g: (0, 0)),        # shared packed weights
            pl.BlockSpec(b_slab.shape, lambda g: (0, 0)),        # shared packed biases
        ],
        out_specs=pl.BlockSpec((None, C, O), lambda g: (g, 0, 0)),
        compiler_params=pltpu.CompilerParams(
            dimension_semantics=("parallel",)),
    )(adj_chunks, x_chunks, pool, w_slab, b_slab)
    return out.reshape(B, O)


def schetnet_graph_forward(x, edge_index, batch, params):
    """Equivalent of SCHetNetGraph.forward(x, edge_index, batch) for a single graph."""
    del batch  # single graph; matches model.forward_graph(x, edge_index)
    N = x.shape[0]
    adj = build_dense_adjacency(edge_index, N)
    return schetnet_graph_forward_batched(x[None], adj[None], params)        # [1, O]


def reference_forward(x, adj, params):
    """Pure-JAX f32 reference of the assumed forward_graph."""
    agg1 = adj @ x
    h1 = jax.nn.relu(x @ params["w1_self"] + agg1 @ params["w1_nbr"] + params["b1"])
    agg2 = adj @ h1
    h2 = jax.nn.relu(h1 @ params["w2_self"] + agg2 @ params["w2_nbr"] + params["b2"])
    pooled = h2.mean(axis=0, keepdims=True)
    return pooled @ params["w_out"] + params["b_out"]


def init_params(key, feat_dim, hidden_dim, out_dim):
    ks = jax.random.split(key, 6)
    scale = 0.1
    return {
        "w1_self": scale * jax.random.normal(ks[0], (feat_dim, hidden_dim), jnp.float32),
        "w1_nbr":  scale * jax.random.normal(ks[1], (feat_dim, hidden_dim), jnp.float32),
        "b1":      jnp.zeros((1, hidden_dim), jnp.float32),
        "w2_self": scale * jax.random.normal(ks[2], (hidden_dim, hidden_dim), jnp.float32),
        "w2_nbr":  scale * jax.random.normal(ks[3], (hidden_dim, hidden_dim), jnp.float32),
        "b2":      jnp.zeros((1, hidden_dim), jnp.float32),
        "w_out":   scale * jax.random.normal(ks[4], (hidden_dim, out_dim), jnp.float32),
        "b_out":   jnp.zeros((1, out_dim), jnp.float32),
    }


if __name__ == "__main__":
    key = jax.random.PRNGKey(0)
    k_x, k_e, k_p, k_b = jax.random.split(key, 4)

    N = 16        # nodes in the chemistry graph (species + reactions)
    F = 32        # node-feature dim produced by SCHetNet.forward_linear
    H = 32        # hidden dim of the graph layers
    O = 4         # graph-level output dim
    E = 40        # number of directed edges
    B = 8         # demo batch of graphs (fused as 2 chunks x 4 graphs = 64 rows/step)

    x = jax.random.normal(k_x, (N, F), jnp.float32)
    edge_index = jax.random.randint(k_e, (2, E), 0, N, dtype=jnp.int32)
    batch = jnp.zeros((N,), jnp.int32)   # single graph; ignored by forward_graph
    params = init_params(k_p, F, H, O)

    # --- single-graph path (matches SCHetNetGraph.forward semantics) ---
    out = jax.block_until_ready(schetnet_graph_forward(x, edge_index, batch, params))
    assert out.shape == (1, O)

    # --- batched path: B graphs fused into block-diagonal chunks ---
    adj = build_dense_adjacency(edge_index, N)
    xs = jnp.stack([x] * B) + 0.01 * jax.random.normal(k_b, (B, N, F), jnp.float32)
    adjs = jnp.stack([adj] * B)
    out_b = jax.block_until_ready(schetnet_graph_forward_batched(xs, adjs, params))
    assert out_b.shape == (B, O)

    # --- numerical checks vs pure-JAX f32 reference (bf16 MXU path -> loose tol) ---
    ref = reference_forward(x, adj, params)
    assert jnp.allclose(out, ref, atol=0.1, rtol=0.1), (out, ref)
    ref_b = jax.vmap(lambda xi, ai: reference_forward(xi, ai, params)[0])(xs, adjs)
    assert jnp.allclose(out_b, ref_b, atol=0.1, rtol=0.1), (out_b, ref_b)
    assert jnp.all(jnp.isfinite(out_b))

    print("KERNEL_OK")
</pallas_src>

<mosaic_0001>
module attributes {stable_mosaic.version = 11 : i64} {
  func.func @schet_graph_kernel(%arg0: i32, %arg1: memref<1x16x16xbf16, #tpu.memory_space<vmem>>, %arg2: memref<1x16x32xbf16, #tpu.memory_space<vmem>>, %arg3: memref<1x16xbf16, #tpu.memory_space<vmem>>, %arg4: memref<160x32xbf16, #tpu.memory_space<vmem>>, %arg5: memref<3x32xf32, #tpu.memory_space<vmem>>, %arg6: memref<1x1x4xf32, #tpu.memory_space<vmem>>) attributes {dimension_semantics = [#tpu.dimension_semantics<parallel>], iteration_bounds = array<i64: 1>, scalar_prefetch = 0 : i64, scratch_operands = 0 : i64, tpu.core_type = #tpu.core_type<tc>, window_params = [{transform_indices = @transform_0, window_bounds = array<i64: 1, 16, 16>}, {transform_indices = @transform_1, window_bounds = array<i64: 1, 16, 32>}, {pipeline_mode = #tpu.pipeline_mode<synchronous>, transform_indices = @transform_2, window_bounds = array<i64: 1, 16>}, {pipeline_mode = #tpu.pipeline_mode<synchronous>, transform_indices = @transform_3, window_bounds = array<i64: 160, 32>}, {pipeline_mode = #tpu.pipeline_mode<synchronous>, transform_indices = @transform_4, window_bounds = array<i64: 3, 32>}, {transform_indices = @transform_5, window_bounds = array<i64: 1, 1, 4>}]} {
    %c0 = arith.constant 0 : index
    %c0_0 = arith.constant 0 : index
    %c0_1 = arith.constant 0 : index
    %0 = vector.load %arg1[%c0, %c0_0, %c0_1] : memref<1x16x16xbf16, #tpu.memory_space<vmem>>, vector<1x16x16xbf16>
    %1 = vector.shape_cast %0 : vector<1x16x16xbf16> to vector<16x16xbf16>
    %c0_2 = arith.constant 0 : index
    %c0_3 = arith.constant 0 : index
    %c0_4 = arith.constant 0 : index
    %2 = vector.load %arg2[%c0_2, %c0_3, %c0_4] : memref<1x16x32xbf16, #tpu.memory_space<vmem>>, vector<1x16x32xbf16>
    %3 = vector.shape_cast %2 : vector<1x16x32xbf16> to vector<16x32xbf16>
    %c0_5 = arith.constant 0 : index
    %c0_6 = arith.constant 0 : index
    %4 = vector.load %arg4[%c0_5, %c0_6] : memref<160x32xbf16, #tpu.memory_space<vmem>>, vector<32x32xbf16>
    %c32 = arith.constant 32 : index
    %c0_7 = arith.constant 0 : index
    %5 = vector.load %arg4[%c32, %c0_7] : memref<160x32xbf16, #tpu.memory_space<vmem>>, vector<32x32xbf16>
    %c64 = arith.constant 64 : index
    %c0_8 = arith.constant 0 : index
    %6 = vector.load %arg4[%c64, %c0_8] : memref<160x32xbf16, #tpu.memory_space<vmem>>, vector<32x32xbf16>
    %c96 = arith.constant 96 : index
    %c0_9 = arith.constant 0 : index
    %7 = vector.load %arg4[%c96, %c0_9] : memref<160x32xbf16, #tpu.memory_space<vmem>>, vector<32x32xbf16>
    %c128 = arith.constant 128 : index
    %c0_10 = arith.constant 0 : index
    %8 = vector.load %arg4[%c128, %c0_10] : memref<160x32xbf16, #tpu.memory_space<vmem>>, vector<32x32xbf16>
    %c0_11 = arith.constant 0 : index
    %c0_12 = arith.constant 0 : index
    %9 = vector.load %arg5[%c0_11, %c0_12] : memref<3x32xf32, #tpu.memory_space<vmem>>, vector<1x32xf32>
    %c1 = arith.constant 1 : index
    %c0_13 = arith.constant 0 : index
    %10 = vector.load %arg5[%c1, %c0_13] : memref<3x32xf32, #tpu.memory_space<vmem>>, vector<1x32xf32>
    %c2 = arith.constant 2 : index
    %c0_14 = arith.constant 0 : index
    %11 = vector.load %arg5[%c2, %c0_14] : memref<3x32xf32, #tpu.memory_space<vmem>>, vector<1x4xf32>
    %cst = arith.constant dense<0.000000e+00> : vector<16x32xf32>
    %12 = tpu.matmul %3, %4, %cst {dimension_numbers = #tpu.dot_dimension_numbers<[1], [0], [0], [1], [0, 0, 1, 1], [], []>} : vector<16x32xbf16>, vector<32x32xbf16>, vector<16x32xf32> -> vector<16x32xf32>
    %cst_15 = arith.constant dense<0.000000e+00> : vector<16x32xf32>
    %13 = tpu.matmul %3, %5, %cst_15 {dimension_numbers = #tpu.dot_dimension_numbers<[1], [0], [0], [1], [0, 0, 1, 1], [], []>} : vector<16x32xbf16>, vector<32x32xbf16>, vector<16x32xf32> -> vector<16x32xf32>
    %14 = arith.truncf %13 : vector<16x32xf32> to vector<16x32xbf16>
    %cst_16 = arith.constant dense<0.000000e+00> : vector<16x32xf32>
    %15 = tpu.matmul %1, %14, %cst_16 {dimension_numbers = #tpu.dot_dimension_numbers<[1], [0], [0], [1], [0, 0, 1, 1], [], []>} : vector<16x16xbf16>, vector<16x32xbf16>, vector<16x32xf32> -> vector<16x32xf32>
    %16 = arith.addf %12, %15 : vector<16x32xf32>
    %17 = vector.broadcast %9 : vector<1x32xf32> to vector<16x32xf32>
    %18 = arith.addf %16, %17 : vector<16x32xf32>
    %cst_17 = arith.constant 0.000000e+00 : f32
    %19 = vector.broadcast %cst_17 : f32 to vector<16x32xf32>
    %20 = arith.maximumf %18, %19 : vector<16x32xf32>
    %21 = arith.truncf %20 : vector<16x32xf32> to vector<16x32xbf16>
    %cst_18 = arith.constant dense<0.000000e+00> : vector<16x32xf32>
    %22 = tpu.matmul %21, %6, %cst_18 {dimension_numbers = #tpu.dot_dimension_numbers<[1], [0], [0], [1], [0, 0, 1, 1], [], []>} : vector<16x32xbf16>, vector<32x32xbf16>, vector<16x32xf32> -> vector<16x32xf32>
    %cst_19 = arith.constant dense<0.000000e+00> : vector<16x32xf32>
    %23 = tpu.matmul %21, %7, %cst_19 {dimension_numbers = #tpu.dot_dimension_numbers<[1], [0], [0], [1], [0, 0, 1, 1], [], []>} : vector<16x32xbf16>, vector<32x32xbf16>, vector<16x32xf32> -> vector<16x32xf32>
    %24 = arith.truncf %23 : vector<16x32xf32> to vector<16x32xbf16>
    %cst_20 = arith.constant dense<0.000000e+00> : vector<16x32xf32>
    %25 = tpu.matmul %1, %24, %cst_20 {dimension_numbers = #tpu.dot_dimension_numbers<[1], [0], [0], [1], [0, 0, 1, 1], [], []>} : vector<16x16xbf16>, vector<16x32xbf16>, vector<16x32xf32> -> vector<16x32xf32>
    %26 = arith.addf %22, %25 : vector<16x32xf32>
    %27 = vector.broadcast %10 : vector<1x32xf32> to vector<16x32xf32>
    %28 = arith.addf %26, %27 : vector<16x32xf32>
    %cst_21 = arith.constant 0.000000e+00 : f32
    %29 = vector.broadcast %cst_21 : f32 to vector<16x32xf32>
    %30 = arith.maximumf %28, %29 : vector<16x32xf32>
    %31 = arith.truncf %30 : vector<16x32xf32> to vector<16x32xbf16>
    %c0_22 = arith.constant 0 : index
    %c0_23 = arith.constant 0 : index
    %32 = vector.load %arg3[%c0_22, %c0_23] : memref<1x16xbf16, #tpu.memory_space<vmem>>, vector<1x16xbf16>
    %cst_24 = arith.constant dense<0.000000e+00> : vector<1x32xf32>
    %33 = tpu.matmul %32, %31, %cst_24 {dimension_numbers = #tpu.dot_dimension_numbers<[1], [0], [0], [1], [0, 0, 1, 1], [], []>} : vector<1x16xbf16>, vector<16x32xbf16>, vector<1x32xf32> -> vector<1x32xf32>
    %34 = arith.truncf %33 : vector<1x32xf32> to vector<1x32xbf16>
    %cst_25 = arith.constant dense<0.000000e+00> : vector<1x32xf32>
    %35 = tpu.matmul %34, %8, %cst_25 {dimension_numbers = #tpu.dot_dimension_numbers<[1], [0], [0], [1], [0, 0, 1, 1], [], []>} : vector<1x32xbf16>, vector<32x32xbf16>, vector<1x32xf32> -> vector<1x32xf32>
    %36 = vector.extract_strided_slice %35 {offsets = [0, 0], sizes = [1, 4], strides = [1, 1]} : vector<1x32xf32> to vector<1x4xf32>
    %37 = arith.addf %36, %11 : vector<1x4xf32>
    %c0_26 = arith.constant 0 : index
    %c0_27 = arith.constant 0 : index
    %c0_28 = arith.constant 0 : index
    %38 = vector.load %arg6[%c0_26, %c0_27, %c0_28] : memref<1x1x4xf32, #tpu.memory_space<vmem>>, vector<1x1x4xf32>
    %39 = vector.shape_cast %38 : vector<1x1x4xf32> to vector<1x4xf32>
    %40 = vector.shape_cast %37 : vector<1x4xf32> to vector<1x1x4xf32>
    tpu.vector_store %arg6[%c0_26, %c0_27, %c0_28], %40 {strides = array<i32>} : memref<1x1x4xf32, #tpu.memory_space<vmem>>, vector<1x1x4xf32>,
    return
  }
  func.func @transform_0(%arg0: i32) -> (i32, i32, i32) {
    %c0_i32 = arith.constant 0 : i32
    %c0_i32_0 = arith.constant 0 : i32
    %c0_i32_1 = arith.constant 0 : i32
    return %arg0, %c0_i32, %c0_i32_0 : i32, i32, i32
  }
  func.func @transform_1(%arg0: i32) -> (i32, i32, i32) {
    %c0_i32 = arith.constant 0 : i32
    %c0_i32_0 = arith.constant 0 : i32
    %c0_i32_1 = arith.constant 0 : i32
    return %arg0, %c0_i32, %c0_i32_0 : i32, i32, i32
  }
  func.func @transform_2(%arg0: i32) -> (i32, i32) {
    %c0_i32 = arith.constant 0 : i32
    %c0_i32_0 = arith.constant 0 : i32
    %c0_i32_1 = arith.constant 0 : i32
    return %c0_i32, %c0_i32_0 : i32, i32
  }
  func.func @transform_3(%arg0: i32) -> (i32, i32) {
    %c0_i32 = arith.constant 0 : i32
    %c0_i32_0 = arith.constant 0 : i32
    %c0_i32_1 = arith.constant 0 : i32
    return %c0_i32, %c0_i32_0 : i32, i32
  }
  func.func @transform_4(%arg0: i32) -> (i32, i32) {
    %c0_i32 = arith.constant 0 : i32
    %c0_i32_0 = arith.constant 0 : i32
    %c0_i32_1 = arith.constant 0 : i32
    return %c0_i32, %c0_i32_0 : i32, i32
  }
  func.func @transform_5(%arg0: i32) -> (i32, i32, i32) {
    %c0_i32 = arith.constant 0 : i32
    %c0_i32_0 = arith.constant 0 : i32
    %c0_i32_1 = arith.constant 0 : i32
    return %arg0, %c0_i32, %c0_i32_0 : i32, i32, i32
  }
}

</mosaic_0001>

<llo_original>
// kernel: tpu_custom_call.1
$region0: #{tpu_custom_call.1}
  #allocation0 [shape = 'u32[]', space=smem, size = 0x4, offset = 0x4, fixed_abs, tag = 'smem constant byte address 0x4 - core index']
  #allocation1 [shape = 'u32[144,128]{1,0:T(1,128)}', space=vmem, size = 0x12000, scoped, tag = 'internal scratch']
  %s0 = inlined_call_operand.vmem [shape: bf16[1,16,16], index: 0, kind: input, shape index: {}]
  %s1 = inlined_call_operand.vmem [shape: bf16[1,16,32], index: 1, kind: input, shape index: {}]
  %s2 = inlined_call_operand.vmem [shape: bf16[1,16], index: 2, kind: input, shape index: {}]
  %s3 = inlined_call_operand.vmem [shape: bf16[160,32], index: 3, kind: input, shape index: {}]
  %s4 = inlined_call_operand.vmem [shape: f32[3,32], index: 4, kind: input, shape index: {}]
  %s5 = inlined_call_operand.hbm [shape: f32[1,1,4], index: 5, kind: output, shape index: {}]
  %s6 = sld [smem:[#allocation0]]
  $region30: #{tpu_custom_call.1} parent=0
    _
  %s8 = ssub.s32 1, %s6
  %s9 = scalar_select 0, %s8, %s6
  $region1: #{tpu_custom_call.1} parent=0
    #allocation2 [shape = 'u8[512]{0}', space=vmem, size = 0x400, scoped, tag = 'output window, operand 0, single buffered']
    #allocation3 [shape = 's32[1]{0}', space=sflag, size = 0x4, scoped, tag = 'scoped memory for tpu_custom_call.1']
    %10 = vsyncpa [#allocation3], 0
    // Predicated region
    $region2: #{tpu_custom_call.1} parent=1 // pred_check
      _
    $region3: #{tpu_custom_call.1} parent=1 // pred_check_branch
      %12 = sbr.rel (0) target = $region5
    $region4: #{tpu_custom_call.1} parent=1 // pred_region
      _
    $region5: #{tpu_custom_call.1} parent=1 // pred_fallthru
      _
    // Predicated region
    $region6: #{tpu_custom_call.1} parent=1 // pred_check
      _
    $region7: #{tpu_custom_call.1} parent=1 // pred_check_branch
      %14 = sbr.rel (0) target = $region9
    $region8: #{tpu_custom_call.1} parent=1 // pred_region
      _
    $region9: #{tpu_custom_call.1} parent=1 // pred_fallthru
      _
    // Predicated region
    $region10: #{tpu_custom_call.1} parent=1 // pred_check
      _
    $region11: #{tpu_custom_call.1} parent=1 // pred_check_branch
      %16 = sbr.rel (0) target = $region13
    $region12: #{tpu_custom_call.1} parent=1 // pred_region
      _
    $region13: #{tpu_custom_call.1} parent=1 // pred_fallthru
      _
    // Predicated region
    $region14: #{tpu_custom_call.1} parent=1 // pred_check
      _
    $region15: #{tpu_custom_call.1} parent=1 // pred_check_branch
      %18 = sbr.rel (0) target = $region17
    $region16: #{tpu_custom_call.1} parent=1 // pred_region
      _
    $region17: #{tpu_custom_call.1} parent=1 // pred_fallthru
      _
    // Predicated region
    $region18: #{tpu_custom_call.1} parent=1 // pred_check
      _
    $region19: #{tpu_custom_call.1} parent=1 // pred_check_branch
      %20 = sbr.rel (0) target = $region21
    $region20: #{tpu_custom_call.1} parent=1 // pred_region
      _
    $region21: #{tpu_custom_call.1} parent=1 // pred_fallthru
      _
    %v22 = vld [vmem:[%s0] sm:$0xf]
    %v23 = vld [vmem:[%s0 + $0x4] sm:$0xf]
    %v24 = vld [vmem:[%s1] sm:$0xf]
    %v25 = vld [vmem:[%s1 + $0x4] sm:$0xf]
    %v26 = vld [vmem:[%s3] sm:$0xf]
    %v27 = vld [vmem:[%s3 + $0x4] sm:$0xf]
    %v28 = vld [vmem:[%s3 + $0x8] sm:$0xf]
    %v29 = vld [vmem:[%s3 + $0xc] sm:$0xf]
    %v30 = vld [vmem:[%s3 + $0x10] sm:$0xf]
    %v31 = vld [vmem:[%s3 + $0x14] sm:$0xf]
    %v32 = vld [vmem:[%s3 + $0x18] sm:$0xf]
    %v33 = vld [vmem:[%s3 + $0x1c] sm:$0xf]
    %v34 = vld [vmem:[%s3 + $0x20] sm:$0xf]
    %v35 = vld [vmem:[%s3 + $0x24] sm:$0xf]
    %v36 = vld [vmem:[%s3 + $0x28] sm:$0xf]
    %v37 = vld [vmem:[%s3 + $0x2c] sm:$0xf]
    %v38 = vld [vmem:[%s3 + $0x30] sm:$0xf]
    %v39 = vld [vmem:[%s3 + $0x34] sm:$0xf]
    %v40 = vld [vmem:[%s3 + $0x38] sm:$0xf]
    %v41 = vld [vmem:[%s3 + $0x3c] sm:$0xf]
    %v42 = vld [vmem:[%s3 + $0x40] sm:$0xf]
    %v43 = vld [vmem:[%s3 + $0x44] sm:$0xf]
    %v44 = vld [vmem:[%s3 + $0x48] sm:$0xf]
    %v45 = vld [vmem:[%s3 + $0x4c] sm:$0xf]
    %v46 = vld [vmem:[%s4] sm:$0x1]
    %v47 = vld [vmem:[%s4 + $0x1] sm:$0x1]
    %v48 = vld [vmem:[%s4 + $0x2] sm:$0x1]
    %v51 = vunpack.c.l.b16 %v24
    %v52 = vunpack.c.l.b16 %v25
    %v53 = vpack.c.b16 %v52, %v51
    %v58 = vunpack.c.l.b16 %v30
    %v59 = vunpack.c.l.b16 %v31
    %v60 = vunpack.c.l.b16 %v32
    %v61 = vunpack.c.l.b16 %v33
    %v62 = vpack.c.b16 %v59, %v58
    %v63 = vpack.c.b16 %v61, %v60
    %vm66 = vcmask 261120
    %v68 = vsel %vm66, %v53, 0
    %70 = vmatprep.subr.bf16.mxu0 0
    %71 = vmatpush1.bf16.msra.mxu0 0
    %72 = vmatprep.subr.bf16.mxu0 0
    %73 = vmatpush1.bf16.msra.mxu0 0
    %74 = vmatprep.subr.bf16.mxu0 0
    %75 = vmatpush1.bf16.msra.mxu0 0
    %76 = vmatprep.subr.bf16.mxu0 0
    %77 = vmatpush1.bf16.msra.mxu0 0
    %78 = vmatprep.subr.bf16.mxu0 0
    %79 = vmatpush1.bf16.msra.mxu0 0
    %80 = vmatprep.subr.bf16.mxu0 0
    %81 = vmatpush1.bf16.msra.mxu0 0
    %82 = vmatprep.subr.bf16.mxu0 0
    %83 = vmatpush1.bf16.msra.mxu0 %v63
    %84 = vmatprep.subr.bf16.mxu0 0
    %85 = vmatpush1.bf16.msra.mxu0 %v62
    %86 = vmatprep.subr.bf16.mxu0 0
    %87 = vmatpush2.bf16.msra.mxu0 0
    %88 = vmatprep.subr.bf16.mxu0 0
    %89 = vmatpush2.bf16.msra.mxu0 0
    %90 = vmatprep.subr.bf16.mxu0 0
    %91 = vmatpush2.bf16.msra.mxu0 0
    %92 = vmatprep.subr.bf16.mxu0 0
    %93 = vmatpush2.bf16.msra.mxu0 0
    %94 = vmatprep.subr.bf16.mxu0 0
    %95 = vmatpush2.bf16.msra.mxu0 0
    %96 = vmatprep.subr.bf16.mxu0 0
    %97 = vmatpush2.bf16.msra.mxu0 0
    %98 = vmatprep.subr.bf16.mxu0 0
    %99 = vmatpush2.bf16.msra.mxu0 0
    %100 = vmatprep.subr.bf16.mxu0 0
    %101 = vmatpush2.bf16.msra.mxu0 0
    %102 = vmatprep.mubr.bf16.mxu0 0
    %103 = vmatmul.mubr.bf16.gmra.mxu0 %v68
    %v104 = vpop.f32.mrf.mxu0
    %v105 = vadd.f32 0.0, %v104
    %v106 = vpop.f32.mrf.mxu0
    %v107 = vpop.f32.mrf.mxu0
    %v108 = vadd.f32 0.0, %v107
    %v109 = vpop.f32.mrf.mxu0
    %110 = vdwg.mxu0
    %v111 = vpack.c.bf16 %v108, %v105
    %v114 = vunpack.c.l.b16 %v22
    %v115 = vunpack.c.l.b16 %v23
    %v116 = vpack.c.b16 %v115, %v114
    %vm117 = vcmask 130048
    %v119 = vsel %vm117, %v116, 0
    %121 = vmatprep.subr.bf16.mxu0 0
    %122 = vmatpush1.bf16.msra.mxu0 0
    %123 = vmatprep.subr.bf16.mxu0 0
    %124 = vmatpush1.bf16.msra.mxu0 0
    %125 = vmatprep.subr.bf16.mxu0 0
    %126 = vmatpush1.bf16.msra.mxu0 0
    %127 = vmatprep.subr.bf16.mxu0 0
    %128 = vmatpush1.bf16.msra.mxu0 0
    %129 = vmatprep.subr.bf16.mxu0 0
    %130 = vmatpush1.bf16.msra.mxu0 0
    %131 = vmatprep.subr.bf16.mxu0 0
    %132 = vmatpush1.bf16.msra.mxu0 0
    %133 = vmatprep.subr.bf16.mxu0 0
    %134 = vmatpush1.bf16.msra.mxu0 0
    %135 = vmatprep.subr.bf16.mxu0 0
    %136 = vmatpush1.bf16.msra.mxu0 %v111
    %137 = vmatprep.subr.bf16.mxu0 0
    %138 = vmatpush2.bf16.msra.mxu0 0
    %139 = vmatprep.subr.bf16.mxu0 0
    %140 = vmatpush2.bf16.msra.mxu0 0
    %141 = vmatprep.subr.bf16.mxu0 0
    %142 = vmatpush2.bf16.msra.mxu0 0
    %143 = vmatprep.subr.bf16.mxu0 0
    %144 = vmatpush2.bf16.msra.mxu0 0
    %145 = vmatprep.subr.bf16.mxu0 0
    %146 = vmatpush2.bf16.msra.mxu0 0
    %147 = vmatprep.subr.bf16.mxu0 0
    %148 = vmatpush2.bf16.msra.mxu0 0
    %149 = vmatprep.subr.bf16.mxu0 0
    %150 = vmatpush2.bf16.msra.mxu0 0
    %151 = vmatprep.subr.bf16.mxu0 0
    %152 = vmatpush2.bf16.msra.mxu0 0
    %153 = vmatprep.mubr.bf16.mxu0 0
    %154 = vmatmul.mubr.bf16.gmra.mxu0 %v119
    %v155 = vpop.f32.mrf.mxu0
    %v156 = vadd.f32 0.0, %v155
    %v157 = vpop.f32.mrf.mxu0
    %v158 = vpop.f32.mrf.mxu0
    %v159 = vadd.f32 0.0, %v158
    %v160 = vpop.f32.mrf.mxu0
    %161 = vdwg.mxu0
    %v166 = vunpack.c.l.b16 %v26
    %v167 = vunpack.c.l.b16 %v27
    %v168 = vunpack.c.l.b16 %v28
    %v169 = vunpack.c.l.b16 %v29
    %v170 = vpack.c.b16 %v167, %v166
    %v171 = vpack.c.b16 %v169, %v168
    %174 = vmatprep.subr.bf16.mxu0 0
    %175 = vmatpush1.bf16.msra.mxu0 0
    %176 = vmatprep.subr.bf16.mxu0 0
    %177 = vmatpush1.bf16.msra.mxu0 0
    %178 = vmatprep.subr.bf16.mxu0 0
    %179 = vmatpush1.bf16.msra.mxu0 0
    %180 = vmatprep.subr.bf16.mxu0 0
    %181 = vmatpush1.bf16.msra.mxu0 0
    %182 = vmatprep.subr.bf16.mxu0 0
    %183 = vmatpush1.bf16.msra.mxu0 0
    %184 = vmatprep.subr.bf16.mxu0 0
    %185 = vmatpush1.bf16.msra.mxu0 0
    %186 = vmatprep.subr.bf16.mxu0 0
    %187 = vmatpush1.bf16.msra.mxu0 %v171
    %188 = vmatprep.subr.bf16.mxu0 0
    %189 = vmatpush1.bf16.msra.mxu0 %v170
    %190 = vmatprep.subr.bf16.mxu0 0
    %191 = vmatpush2.bf16.msra.mxu0 0
    %192 = vmatprep.subr.bf16.mxu0 0
    %193 = vmatpush2.bf16.msra.mxu0 0
    %194 = vmatprep.subr.bf16.mxu0 0
    %195 = vmatpush2.bf16.msra.mxu0 0
    %196 = vmatprep.subr.bf16.mxu0 0
    %197 = vmatpush2.bf16.msra.mxu0 0
    %198 = vmatprep.subr.bf16.mxu0 0
    %199 = vmatpush2.bf16.msra.mxu0 0
    %200 = vmatprep.subr.bf16.mxu0 0
    %201 = vmatpush2.bf16.msra.mxu0 0
    %202 = vmatprep.subr.bf16.mxu0 0
    %203 = vmatpush2.bf16.msra.mxu0 0
    %204 = vmatprep.subr.bf16.mxu0 0
    %205 = vmatpush2.bf16.msra.mxu0 0
    %206 = vmatprep.mubr.bf16.mxu0 0
    %207 = vmatmul.mubr.bf16.gmra.mxu0 %v68
    %v208 = vpop.f32.mrf.mxu0
    %v209 = vadd.f32 %v156, %v208
    %v210 = vpop.f32.mrf.mxu0
    %v211 = vpop.f32.mrf.mxu0
    %v212 = vadd.f32 %v159, %v211
    %v213 = vpop.f32.mrf.mxu0
    %214 = vdwg.mxu0
    %v215 = vlaneseq
    %v216 = vshrl.u32 %v215, 7
    %v217 = vsub.s32 0, %v216
    %v218 = vrot.slane %v46, %v217
    %v219 = vadd.f32 %v209, %v218
    %v220 = vadd.f32 %v212, %v218
    %v221 = vmax.f32 %v219, 0.0
    %v222 = vmax.f32 %v220, 0.0
    %v223 = vpack.c.bf16 %v222, %v221
    %v228 = vunpack.c.l.b16 %v38
    %v229 = vunpack.c.l.b16 %v39
    %v230 = vunpack.c.l.b16 %v40
    %v231 = vunpack.c.l.b16 %v41
    %v232 = vpack.c.b16 %v229, %v228
    %v233 = vpack.c.b16 %v231, %v230
    %v237 = vsel %vm66, %v223, 0
    %239 = vmatprep.subr.bf16.mxu0 0
    %240 = vmatpush1.bf16.msra.mxu0 0
    %241 = vmatprep.subr.bf16.mxu0 0
    %242 = vmatpush1.bf16.msra.mxu0 0
    %243 = vmatprep.subr.bf16.mxu0 0
    %244 = vmatpush1.bf16.msra.mxu0 0
    %245 = vmatprep.subr.bf16.mxu0 0
    %246 = vmatpush1.bf16.msra.mxu0 0
    %247 = vmatprep.subr.bf16.mxu0 0
    %248 = vmatpush1.bf16.msra.mxu0 0
    %249 = vmatprep.subr.bf16.mxu0 0
    %250 = vmatpush1.bf16.msra.mxu0 0
    %251 = vmatprep.subr.bf16.mxu0 0
    %252 = vmatpush1.bf16.msra.mxu0 %v233
    %253 = vmatprep.subr.bf16.mxu0 0
    %254 = vmatpush1.bf16.msra.mxu0 %v232
    %255 = vmatprep.subr.bf16.mxu0 0
    %256 = vmatpush2.bf16.msra.mxu0 0
    %257 = vmatprep.subr.bf16.mxu0 0
    %258 = vmatpush2.bf16.msra.mxu0 0
    %259 = vmatprep.subr.bf16.mxu0 0
    %260 = vmatpush2.bf16.msra.mxu0 0
    %261 = vmatprep.subr.bf16.mxu0 0
    %262 = vmatpush2.bf16.msra.mxu0 0
    %263 = vmatprep.subr.bf16.mxu0 0
    %264 = vmatpush2.bf16.msra.mxu0 0
    %265 = vmatprep.subr.bf16.mxu0 0
    %266 = vmatpush2.bf16.msra.mxu0 0
    %267 = vmatprep.subr.bf16.mxu0 0
    %268 = vmatpush2.bf16.msra.mxu0 0
    %269 = vmatprep.subr.bf16.mxu0 0
    %270 = vmatpush2.bf16.msra.mxu0 0
    %271 = vmatprep.mubr.bf16.mxu0 0
    %272 = vmatmul.mubr.bf16.gmra.mxu0 %v237
    %v273 = vpop.f32.mrf.mxu0
    %v274 = vadd.f32 0.0, %v273
    %v275 = vpop.f32.mrf.mxu0
    %v276 = vpop.f32.mrf.mxu0
    %v277 = vadd.f32 0.0, %v276
    %v278 = vpop.f32.mrf.mxu0
    %279 = vdwg.mxu0
    %v280 = vpack.c.bf16 %v277, %v274
    %281 = vmatprep.subr.bf16.mxu0 0
    %282 = vmatpush1.bf16.msra.mxu0 0
    %283 = vmatprep.subr.bf16.mxu0 0
    %284 = vmatpush1.bf16.msra.mxu0 0
    %285 = vmatprep.subr.bf16.mxu0 0
    %286 = vmatpush1.bf16.msra.mxu0 0
    %287 = vmatprep.subr.bf16.mxu0 0
    %288 = vmatpush1.bf16.msra.mxu0 0
    %289 = vmatprep.subr.bf16.mxu0 0
    %290 = vmatpush1.bf16.msra.mxu0 0
    %291 = vmatprep.subr.bf16.mxu0 0
    %292 = vmatpush1.bf16.msra.mxu0 0
    %293 = vmatprep.subr.bf16.mxu0 0
    %294 = vmatpush1.bf16.msra.mxu0 0
    %295 = vmatprep.subr.bf16.mxu0 0
    %296 = vmatpush1.bf16.msra.mxu0 %v280
    %297 = vmatprep.subr.bf16.mxu0 0
    %298 = vmatpush2.bf16.msra.mxu0 0
    %299 = vmatprep.subr.bf16.mxu0 0
    %300 = vmatpush2.bf16.msra.mxu0 0
    %301 = vmatprep.subr.bf16.mxu0 0
    %302 = vmatpush2.bf16.msra.mxu0 0
    %303 = vmatprep.subr.bf16.mxu0 0
    %304 = vmatpush2.bf16.msra.mxu0 0
    %305 = vmatprep.subr.bf16.mxu0 0
    %306 = vmatpush2.bf16.msra.mxu0 0
    %307 = vmatprep.subr.bf16.mxu0 0
    %308 = vmatpush2.bf16.msra.mxu0 0
    %309 = vmatprep.subr.bf16.mxu0 0
    %310 = vmatpush2.bf16.msra.mxu0 0
    %311 = vmatprep.subr.bf16.mxu0 0
    %312 = vmatpush2.bf16.msra.mxu0 0
    %313 = vmatprep.mubr.bf16.mxu0 0
    %314 = vmatmul.mubr.bf16.gmra.mxu0 %v119
    %v315 = vpop.f32.mrf.mxu0
    %v316 = vadd.f32 0.0, %v315
    %v317 = vpop.f32.mrf.mxu0
    %v318 = vpop.f32.mrf.mxu0
    %v319 = vadd.f32 0.0, %v318
    %v320 = vpop.f32.mrf.mxu0
    %321 = vdwg.mxu0
    %v326 = vunpack.c.l.b16 %v34
    %v327 = vunpack.c.l.b16 %v35
    %v328 = vunpack.c.l.b16 %v36
    %v329 = vunpack.c.l.b16 %v37
    %v330 = vpack.c.b16 %v327, %v326
    %v331 = vpack.c.b16 %v329, %v328
    %334 = vmatprep.subr.bf16.mxu0 0
    %335 = vmatpush1.bf16.msra.mxu0 0
    %336 = vmatprep.subr.bf16.mxu0 0
    %337 = vmatpush1.bf16.msra.mxu0 0
    %338 = vmatprep.subr.bf16.mxu0 0
    %339 = vmatpush1.bf16.msra.mxu0 0
    %340 = vmatprep.subr.bf16.mxu0 0
    %341 = vmatpush1.bf16.msra.mxu0 0
    %342 = vmatprep.subr.bf16.mxu0 0
    %343 = vmatpush1.bf16.msra.mxu0 0
    %344 = vmatprep.subr.bf16.mxu0 0
    %345 = vmatpush1.bf16.msra.mxu0 0
    %346 = vmatprep.subr.bf16.mxu0 0
    %347 = vmatpush1.bf16.msra.mxu0 %v331
    %348 = vmatprep.subr.bf16.mxu0 0
    %349 = vmatpush1.bf16.msra.mxu0 %v330
    %350 = vmatprep.subr.bf16.mxu0 0
    %351 = vmatpush2.bf16.msra.mxu0 0
    %352 = vmatprep.subr.bf16.mxu0 0
    %353 = vmatpush2.bf16.msra.mxu0 0
    %354 = vmatprep.subr.bf16.mxu0 0
    %355 = vmatpush2.bf16.msra.mxu0 0
    %356 = vmatprep.subr.bf16.mxu0 0
    %357 = vmatpush2.bf16.msra.mxu0 0
    %358 = vmatprep.subr.bf16.mxu0 0
    %359 = vmatpush2.bf16.msra.mxu0 0
    %360 = vmatprep.subr.bf16.mxu0 0
    %361 = vmatpush2.bf16.msra.mxu0 0
    %362 = vmatprep.subr.bf16.mxu0 0
    %363 = vmatpush2.bf16.msra.mxu0 0
    %364 = vmatprep.subr.bf16.mxu0 0
    %365 = vmatpush2.bf16.msra.mxu0 0
    %366 = vmatprep.mubr.bf16.mxu0 0
    %367 = vmatmul.mubr.bf16.gmra.mxu0 %v237
    %v368 = vpop.f32.mrf.mxu0
    %v369 = vadd.f32 %v316, %v368
    %v370 = vpop.f32.mrf.mxu0
    %v371 = vpop.f32.mrf.mxu0
    %v372 = vadd.f32 %v319, %v371
    %v373 = vpop.f32.mrf.mxu0
    %374 = vdwg.mxu0
    %v375 = vlaneseq
    %v376 = vshrl.u32 %v375, 7
    %v377 = vsub.s32 0, %v376
    %v378 = vrot.slane %v47, %v377
    %v379 = vadd.f32 %v369, %v378
    %v380 = vadd.f32 %v372, %v378
    %v381 = vmax.f32 %v379, 0.0
    %v382 = vmax.f32 %v380, 0.0
    %v383 = vpack.c.bf16 %v382, %v381
    %v384 = vld [vmem:[%s2] sm:$0x1]
    %v386 = vsel %vm117, %v384, 0
    %388 = vmatprep.subr.bf16.mxu0 0
    %389 = vmatpush1.bf16.msra.mxu0 0
    %390 = vmatprep.subr.bf16.mxu0 0
    %391 = vmatpush1.bf16.msra.mxu0 0
    %392 = vmatprep.subr.bf16.mxu0 0
    %393 = vmatpush1.bf16.msra.mxu0 0
    %394 = vmatprep.subr.bf16.mxu0 0
    %395 = vmatpush1.bf16.msra.mxu0 0
    %396 = vmatprep.subr.bf16.mxu0 0
    %397 = vmatpush1.bf16.msra.mxu0 0
    %398 = vmatprep.subr.bf16.mxu0 0
    %399 = vmatpush1.bf16.msra.mxu0 0
    %400 = vmatprep.subr.bf16.mxu0 0
    %401 = vmatpush1.bf16.msra.mxu0 0
    %402 = vmatprep.subr.bf16.mxu0 0
    %403 = vmatpush1.bf16.msra.mxu0 %v383
    %404 = vmatprep.subr.bf16.mxu0 0
    %405 = vmatpush2.bf16.msra.mxu0 0
    %406 = vmatprep.subr.bf16.mxu0 0
    %407 = vmatpush2.bf16.msra.mxu0 0
    %408 = vmatprep.subr.bf16.mxu0 0
    %409 = vmatpush2.bf16.msra.mxu0 0
    %410 = vmatprep.subr.bf16.mxu0 0
    %411 = vmatpush2.bf16.msra.mxu0 0
    %412 = vmatprep.subr.bf16.mxu0 0
    %413 = vmatpush2.bf16.msra.mxu0 0
    %414 = vmatprep.subr.bf16.mxu0 0
    %415 = vmatpush2.bf16.msra.mxu0 0
    %416 = vmatprep.subr.bf16.mxu0 0
    %417 = vmatpush2.bf16.msra.mxu0 0
    %418 = vmatprep.subr.bf16.mxu0 0
    %419 = vmatpush2.bf16.msra.mxu0 0
    %420 = vmatprep.mubr.bf16.mxu0 0
    %421 = vmatmul.mubr.bf16.gmra.mxu0 %v386
    %v422 = vpop.f32.mrf.mxu0
    %v423 = vadd.f32 0.0, %v422
    %v424 = vpop.f32.mrf.mxu0
    %v425 = vpop.f32.mrf.mxu0
    %v426 = vpop.f32.mrf.mxu0
    %427 = vdwg.mxu0
    %v428 = vpack.c.bf16 %v423, %v423
    %v433 = vunpack.c.l.b16 %v42
    %v434 = vunpack.c.l.b16 %v43
    %v435 = vunpack.c.l.b16 %v44
    %v436 = vunpack.c.l.b16 %v45
    %v437 = vpack.c.b16 %v434, %v433
    %v438 = vpack.c.b16 %v436, %v435
    %v442 = vsel %vm66, %v428, 0
    %444 = vmatprep.subr.bf16.mxu0 0
    %445 = vmatpush1.bf16.msra.mxu0 0
    %446 = vmatprep.subr.bf16.mxu0 0
    %447 = vmatpush1.bf16.msra.mxu0 0
    %448 = vmatprep.subr.bf16.mxu0 0
    %449 = vmatpush1.bf16.msra.mxu0 0
    %450 = vmatprep.subr.bf16.mxu0 0
    %451 = vmatpush1.bf16.msra.mxu0 0
    %452 = vmatprep.subr.bf16.mxu0 0
    %453 = vmatpush1.bf16.msra.mxu0 0
    %454 = vmatprep.subr.bf16.mxu0 0
    %455 = vmatpush1.bf16.msra.mxu0 0
    %456 = vmatprep.subr.bf16.mxu0 0
    %457 = vmatpush1.bf16.msra.mxu0 %v438
    %458 = vmatprep.subr.bf16.mxu0 0
    %459 = vmatpush1.bf16.msra.mxu0 %v437
    %460 = vmatprep.subr.bf16.mxu0 0
    %461 = vmatpush2.bf16.msra.mxu0 0
    %462 = vmatprep.subr.bf16.mxu0 0
    %463 = vmatpush2.bf16.msra.mxu0 0
    %464 = vmatprep.subr.bf16.mxu0 0
    %465 = vmatpush2.bf16.msra.mxu0 0
    %466 = vmatprep.subr.bf16.mxu0 0
    %467 = vmatpush2.bf16.msra.mxu0 0
    %468 = vmatprep.subr.bf16.mxu0 0
    %469 = vmatpush2.bf16.msra.mxu0 0
    %470 = vmatprep.subr.bf16.mxu0 0
    %471 = vmatpush2.bf16.msra.mxu0 0
    %472 = vmatprep.subr.bf16.mxu0 0
    %473 = vmatpush2.bf16.msra.mxu0 0
    %474 = vmatprep.subr.bf16.mxu0 0
    %475 = vmatpush2.bf16.msra.mxu0 0
    %476 = vmatprep.mubr.bf16.mxu0 0
    %477 = vmatmul.mubr.bf16.gmra.mxu0 %v442
    %v478 = vpop.f32.mrf.mxu0
    %v479 = vadd.f32 0.0, %v478
    %v480 = vpop.f32.mrf.mxu0
    %v481 = vpop.f32.mrf.mxu0
    %v482 = vpop.f32.mrf.mxu0
    %483 = vdwg.mxu0
    %v484 = vadd.f32 %v479, %v48
    %vm485 = vcmask 24576
    %486 = vst.msk [vmem:[#allocation2] sm:$0x1] %vm485, %v484
    // Predicated region
    $region22: #{tpu_custom_call.1} parent=1 // pred_check
      _
    $region23: #{tpu_custom_call.1} parent=1 // pred_check_branch
      %488 = sbr.rel (0) target = $region25
    $region24: #{tpu_custom_call.1} parent=1 // pred_region
      %s490 = ssub.s32 16, 16
      %491 = vsyncadd [#allocation3], %s490
      %s493 = sshll.u32 [#allocation2], 4
      %s494 = int_to_ptr.vmem [resolvable:$true] %s493
      %496 = dma.vmem_to_hbm [thread:$0]  %s494, 16, %s5, [#allocation3]
    $region25: #{tpu_custom_call.1} parent=1 // pred_fallthru
      _
    // Predicated region
    $region26: #{tpu_custom_call.1} parent=1 // pred_check
      _
    $region27: #{tpu_custom_call.1} parent=1 // pred_check_branch
      %498 = sbr.rel (0) target = $region29
    $region28: #{tpu_custom_call.1} parent=1 // pred_region
      %499 = dma.done [#allocation3], 16
    $region29: #{tpu_custom_call.1} parent=1 // pred_fallthru
      _
    %500 = vsyncpa [#allocation3], 1

</llo_original>
